<compile_context>
chip_gen: v7x
topology: tpu7x:2x2x1
jax: 0.10.0
libtpu: 0.0.40
codegen_flags: <defaults>
</compile_context>

<pallas_src>
import numpy as np
import jax
import jax.numpy as jnp
from jax import lax
from jax.experimental import pallas as pl
from jax.experimental.pallas import tpu as pltpu


def _orthogonal(shape, gain, seed):
    """Deterministic orthogonal init (matches torch.nn.init.orthogonal_ semantics)."""
    rng = np.random.RandomState(seed)
    rows, cols = shape
    flat = rng.normal(size=(max(rows, cols), min(rows, cols)))
    q, r = np.linalg.qr(flat)
    q = q * np.sign(np.diag(r))  # deterministic sign convention
    if rows < cols:
        q = q.T
    return jnp.asarray(gain * q[:rows, :cols], dtype=jnp.float32)


def _round_up(n, m):
    return ((n + m - 1) // m) * m


def _make_actor_kernel(max_action):
    # Contract the last axis of both operands (A @ B^T) - the well-trodden
    # flash-attention dot pattern.
    nt_dims = (((1,), (1,)), ((), ()))

    def actor_kernel(x_ref, w1_ref, b1_ref, w2_ref, b2_ref, w3_ref, b3_ref, out_ref):
        # x_ref: (tb, in_dim).  Contract the feature axes so the batch lands on
        # the 128-lane axis: h1t = W1 @ x^T -> (H, tb).  Full EUP occupancy for
        # tanh since H = 32 << 128.
        h1t = jnp.tanh(
            lax.dot_general(w1_ref[...], x_ref[...], nt_dims,
                            preferred_element_type=jnp.float32)
            + b1_ref[...]
        )
        # fc2 + tanh -> (H, tb)
        h2t = jnp.tanh(
            jnp.dot(w2_ref[...], h1t, preferred_element_type=jnp.float32)
            + b2_ref[...]
        )
        # Back to (batch, feature) in VMEM (XLU transpose, no HBM traffic) so
        # the output block is (tb, A) and lands straight in the (B, A) output.
        h2 = h2t.T  # (tb, H)
        logits = (
            lax.dot_general(h2, w3_ref[...], nt_dims,
                            preferred_element_type=jnp.float32)
            + b3_ref[...]
        )
        # max_action * sigmoid(logits); exact exp + divide (no approx recip).
        out_ref[...] = max_action / (1.0 + jnp.exp(-logits))

    return actor_kernel


def actor_gaussian_forward(x, params, max_action, tile_b=16384):
    """x: (B, state_dim + 1) float32. Returns mean: (B, action_dim) float32.

    params = (w1, b1, w2, b2, w3, b3) with w* shaped (out, in) (PyTorch layout),
    b1/b2 shaped (out, 1) and b3 shaped (1, out).
    """
    w1, b1, w2, b2, w3, b3 = params
    B, in_dim = x.shape
    H = w1.shape[0]
    A = w3.shape[0]

    # Guard the (8, 128) block constraint for the multi-tile path.
    tile_b = max(128, _round_up(int(tile_b), 128))

    if B <= 512:
        tb = B  # single full-extent block (exempt from the /8 divisibility rule)
    else:
        # At least 2 tiles so both v7x TensorCores get work; 128-aligned;
        # capped by tile_b which is sized for v7x's 64 MiB VMEM.
        tb = min(tile_b, _round_up(-(-B // 2), 128))
    grid = (-(-B // tb),)  # cdiv; ragged last block handled by Pallas masking

    kernel = _make_actor_kernel(float(max_action))

    # Weights/biases: constant index_map -> resident in VMEM across grid steps.
    def resident(p):
        return pl.BlockSpec(p.shape, lambda i: (0,) * p.ndim)

    param_bytes = sum(int(np.prod(p.shape)) * 4 for p in params)
    cost = pl.CostEstimate(
        flops=2 * B * (in_dim * H + H * H + H * A),
        transcendentals=B * (2 * H + A),
        bytes_accessed=B * (in_dim + A) * 4 + param_bytes,
    )

    return pl.pallas_call(
        kernel,
        out_shape=jax.ShapeDtypeStruct((B, A), jnp.float32),
        grid=grid,
        in_specs=[
            pl.BlockSpec((tb, in_dim), lambda i: (i, 0)),  # batch-tiled x, no transpose
            resident(w1), resident(b1),
            resident(w2), resident(b2),
            resident(w3), resident(b3),
        ],
        out_specs=pl.BlockSpec((tb, A), lambda i: (i, 0)),  # direct (B, A) output
        compiler_params=pltpu.CompilerParams(
            dimension_semantics=("parallel",),      # shard batch tiles across TCs
            vmem_limit_bytes=40 * 1024 * 1024,      # ~12 MiB used at tb=16384; v7x-safe
        ),
        cost_estimate=cost,
    )(x, w1, b1, w2, b2, w3, b3)


if __name__ == "__main__":
    # Module hyperparameters (args):
    state_dim = 7            # fc1 input = state_dim + 1 = 8
    hidden_width = 32
    action_dim_gauss = 4
    max_action = 2.0
    # use_tanh = 1 -> tanh hidden activation; use_orthogonal_init = True

    in_dim = state_dim + 1

    # Deterministic parameter init (orthogonal weights, zero bias), PyTorch
    # orientation (out, in).
    w1 = _orthogonal((hidden_width, in_dim), gain=0.7, seed=1)
    b1 = jnp.zeros((hidden_width, 1), dtype=jnp.float32)
    w2 = _orthogonal((hidden_width, hidden_width), gain=0.7, seed=2)
    b2 = jnp.zeros((hidden_width, 1), dtype=jnp.float32)
    w3 = _orthogonal((action_dim_gauss, hidden_width), gain=0.01, seed=3)
    b3 = jnp.zeros((1, action_dim_gauss), dtype=jnp.float32)
    params = (w1, b1, w2, b2, w3, b3)
    # TODO(synk): self.log_std is a learnable parameter unused in forward();
    # it only affects get_dist(), so it is not part of this kernel.

    def ref_forward(x_np):
        w1n, b1n, w2n, b2n, w3n, b3n = [np.asarray(p, np.float64) for p in params]
        r = np.tanh(x_np.astype(np.float64) @ w1n.T + b1n.T)
        r = np.tanh(r @ w2n.T + b2n.T)
        z = r @ w3n.T + b3n
        return max_action / (1.0 + np.exp(-z))

    def check(batch, key):
        x = jax.random.normal(key, (batch, in_dim), dtype=jnp.float32)
        out = jax.block_until_ready(actor_gaussian_forward(x, params, max_action))
        assert out.shape == (batch, action_dim_gauss)
        np.testing.assert_allclose(
            np.asarray(out), ref_forward(np.asarray(x)), rtol=2e-3, atol=2e-3
        )

    check(8, jax.random.PRNGKey(0))     # small batch: single full-extent block
    check(2304, jax.random.PRNGKey(1))  # two 1152-row tiles (v7x 2-TC split), no pad
    check(2000, jax.random.PRNGKey(2))  # ragged last tile: no pad, no output slice

    print("KERNEL_OK")
</pallas_src>

<mosaic_0001>
module attributes {stable_mosaic.version = 11 : i64} {
  func.func @actor_kernel(%arg0: i32, %arg1: memref<8x8xf32, #tpu.memory_space<vmem>>, %arg2: memref<32x8xf32, #tpu.memory_space<vmem>>, %arg3: memref<32x1xf32, #tpu.memory_space<vmem>>, %arg4: memref<32x32xf32, #tpu.memory_space<vmem>>, %arg5: memref<32x1xf32, #tpu.memory_space<vmem>>, %arg6: memref<4x32xf32, #tpu.memory_space<vmem>>, %arg7: memref<1x4xf32, #tpu.memory_space<vmem>>, %arg8: memref<8x4xf32, #tpu.memory_space<vmem>>) attributes {dimension_semantics = [#tpu.dimension_semantics<parallel>], iteration_bounds = array<i64: 1>, scalar_prefetch = 0 : i64, scratch_operands = 0 : i64, tpu.core_type = #tpu.core_type<tc>, window_params = [{transform_indices = @transform_0, window_bounds = array<i64: 8, 8>}, {pipeline_mode = #tpu.pipeline_mode<synchronous>, transform_indices = @transform_1, window_bounds = array<i64: 32, 8>}, {pipeline_mode = #tpu.pipeline_mode<synchronous>, transform_indices = @transform_2, window_bounds = array<i64: 32, 1>}, {pipeline_mode = #tpu.pipeline_mode<synchronous>, transform_indices = @transform_3, window_bounds = array<i64: 32, 32>}, {pipeline_mode = #tpu.pipeline_mode<synchronous>, transform_indices = @transform_4, window_bounds = array<i64: 32, 1>}, {pipeline_mode = #tpu.pipeline_mode<synchronous>, transform_indices = @transform_5, window_bounds = array<i64: 4, 32>}, {pipeline_mode = #tpu.pipeline_mode<synchronous>, transform_indices = @transform_6, window_bounds = array<i64: 1, 4>}, {transform_indices = @transform_7, window_bounds = array<i64: 8, 4>}]} {
    %c0 = arith.constant 0 : index
    %c0_0 = arith.constant 0 : index
    %0 = vector.load %arg2[%c0, %c0_0] : memref<32x8xf32, #tpu.memory_space<vmem>>, vector<32x8xf32>
    %c0_1 = arith.constant 0 : index
    %c0_2 = arith.constant 0 : index
    %1 = vector.load %arg1[%c0_1, %c0_2] : memref<8x8xf32, #tpu.memory_space<vmem>>, vector<8x8xf32>
    %cst = arith.constant dense<0.000000e+00> : vector<32x8xf32>
    %2 = tpu.matmul %0, %1, %cst {dimension_numbers = #tpu.dot_dimension_numbers<[1], [1], [0], [0], [0, 0, 1, 0], [], []>} : vector<32x8xf32>, vector<8x8xf32>, vector<32x8xf32> -> vector<32x8xf32>
    %c0_3 = arith.constant 0 : index
    %c0_4 = arith.constant 0 : index
    %3 = vector.load %arg3[%c0_3, %c0_4] : memref<32x1xf32, #tpu.memory_space<vmem>>, vector<32x1xf32>
    %4 = vector.broadcast %3 : vector<32x1xf32> to vector<32x8xf32>
    %5 = arith.addf %2, %4 : vector<32x8xf32>
    %6 = math.tanh %5 : vector<32x8xf32>
    %c0_5 = arith.constant 0 : index
    %c0_6 = arith.constant 0 : index
    %7 = vector.load %arg4[%c0_5, %c0_6] : memref<32x32xf32, #tpu.memory_space<vmem>>, vector<32x32xf32>
    %cst_7 = arith.constant dense<0.000000e+00> : vector<32x8xf32>
    %8 = tpu.matmul %7, %6, %cst_7 {dimension_numbers = #tpu.dot_dimension_numbers<[1], [0], [0], [1], [0, 0, 1, 1], [], []>} : vector<32x32xf32>, vector<32x8xf32>, vector<32x8xf32> -> vector<32x8xf32>
    %c0_8 = arith.constant 0 : index
    %c0_9 = arith.constant 0 : index
    %9 = vector.load %arg5[%c0_8, %c0_9] : memref<32x1xf32, #tpu.memory_space<vmem>>, vector<32x1xf32>
    %10 = vector.broadcast %9 : vector<32x1xf32> to vector<32x8xf32>
    %11 = arith.addf %8, %10 : vector<32x8xf32>
    %12 = math.tanh %11 : vector<32x8xf32>
    %13 = tpu.transpose %12, [1, 0] : vector<32x8xf32> -> vector<8x32xf32>
    %c0_10 = arith.constant 0 : index
    %c0_11 = arith.constant 0 : index
    %14 = vector.load %arg6[%c0_10, %c0_11] : memref<4x32xf32, #tpu.memory_space<vmem>>, vector<4x32xf32>
    %cst_12 = arith.constant dense<0.000000e+00> : vector<8x4xf32>
    %15 = tpu.matmul %13, %14, %cst_12 {dimension_numbers = #tpu.dot_dimension_numbers<[1], [1], [0], [0], [0, 0, 1, 0], [], []>} : vector<8x32xf32>, vector<4x32xf32>, vector<8x4xf32> -> vector<8x4xf32>
    %c0_13 = arith.constant 0 : index
    %c0_14 = arith.constant 0 : index
    %16 = vector.load %arg7[%c0_13, %c0_14] : memref<1x4xf32, #tpu.memory_space<vmem>>, vector<1x4xf32>
    %17 = vector.broadcast %16 : vector<1x4xf32> to vector<8x4xf32>
    %18 = arith.addf %15, %17 : vector<8x4xf32>
    %cst_15 = arith.constant 0.000000e+00 : f32
    %19 = vector.broadcast %cst_15 : f32 to vector<8x4xf32>
    %20 = arith.subf %19, %18 : vector<8x4xf32>
    %21 = math.exp %20 : vector<8x4xf32>
    %cst_16 = arith.constant 1.000000e+00 : f32
    %22 = vector.broadcast %cst_16 : f32 to vector<8x4xf32>
    %23 = arith.addf %22, %21 : vector<8x4xf32>
    %cst_17 = arith.constant 2.000000e+00 : f32
    %24 = vector.broadcast %cst_17 : f32 to vector<8x4xf32>
    %25 = arith.divf %24, %23 : vector<8x4xf32>
    %c0_18 = arith.constant 0 : index
    %c0_19 = arith.constant 0 : index
    %26 = vector.load %arg8[%c0_18, %c0_19] : memref<8x4xf32, #tpu.memory_space<vmem>>, vector<8x4xf32>
    tpu.vector_store %arg8[%c0_18, %c0_19], %25 {strides = array<i32>} : memref<8x4xf32, #tpu.memory_space<vmem>>, vector<8x4xf32>,
    return
  }
  func.func @transform_0(%arg0: i32) -> (i32, i32) {
    %c0_i32 = arith.constant 0 : i32
    %c0_i32_0 = arith.constant 0 : i32
    return %arg0, %c0_i32 : i32, i32
  }
  func.func @transform_1(%arg0: i32) -> (i32, i32) {
    %c0_i32 = arith.constant 0 : i32
    %c0_i32_0 = arith.constant 0 : i32
    %c0_i32_1 = arith.constant 0 : i32
    return %c0_i32, %c0_i32_0 : i32, i32
  }
  func.func @transform_2(%arg0: i32) -> (i32, i32) {
    %c0_i32 = arith.constant 0 : i32
    %c0_i32_0 = arith.constant 0 : i32
    %c0_i32_1 = arith.constant 0 : i32
    return %c0_i32, %c0_i32_0 : i32, i32
  }
  func.func @transform_3(%arg0: i32) -> (i32, i32) {
    %c0_i32 = arith.constant 0 : i32
    %c0_i32_0 = arith.constant 0 : i32
    %c0_i32_1 = arith.constant 0 : i32
    return %c0_i32, %c0_i32_0 : i32, i32
  }
  func.func @transform_4(%arg0: i32) -> (i32, i32) {
    %c0_i32 = arith.constant 0 : i32
    %c0_i32_0 = arith.constant 0 : i32
    %c0_i32_1 = arith.constant 0 : i32
    return %c0_i32, %c0_i32_0 : i32, i32
  }
  func.func @transform_5(%arg0: i32) -> (i32, i32) {
    %c0_i32 = arith.constant 0 : i32
    %c0_i32_0 = arith.constant 0 : i32
    %c0_i32_1 = arith.constant 0 : i32
    return %c0_i32, %c0_i32_0 : i32, i32
  }
  func.func @transform_6(%arg0: i32) -> (i32, i32) {
    %c0_i32 = arith.constant 0 : i32
    %c0_i32_0 = arith.constant 0 : i32
    %c0_i32_1 = arith.constant 0 : i32
    return %c0_i32, %c0_i32_0 : i32, i32
  }
  func.func @transform_7(%arg0: i32) -> (i32, i32) {
    %c0_i32 = arith.constant 0 : i32
    %c0_i32_0 = arith.constant 0 : i32
    return %arg0, %c0_i32 : i32, i32
  }
}

</mosaic_0001>

<llo_original>
// kernel: tpu_custom_call.1
$region0: #{tpu_custom_call.1}
  #allocation0 [shape = 'u32[]', space=smem, size = 0x4, offset = 0x4, fixed_abs, tag = 'smem constant byte address 0x4 - core index']
  #allocation1 [shape = 'u32[144,128]{1,0:T(1,128)}', space=vmem, size = 0x12000, scoped, tag = 'internal scratch']
  %s0 = inlined_call_operand.vmem [shape: f32[8,8], index: 0, kind: input, shape index: {}]
  %s1 = inlined_call_operand.vmem [shape: f32[32,8], index: 1, kind: input, shape index: {}]
  %s2 = inlined_call_operand.vmem [shape: f32[32,1], index: 2, kind: input, shape index: {}]
  %s3 = inlined_call_operand.vmem [shape: f32[32,32], index: 3, kind: input, shape index: {}]
  %s4 = inlined_call_operand.vmem [shape: f32[32,1], index: 4, kind: input, shape index: {}]
  %s5 = inlined_call_operand.vmem [shape: f32[4,32], index: 5, kind: input, shape index: {}]
  %s6 = inlined_call_operand.vmem [shape: f32[1,4], index: 6, kind: input, shape index: {}]
  %s7 = inlined_call_operand.vmem [shape: f32[8,4], index: 7, kind: output, shape index: {}]
  %s8 = sld [smem:[#allocation0]]
  $region38: #{tpu_custom_call.1} parent=0
    _
  %s10 = ssub.s32 1, %s8
  %s11 = scalar_select 0, %s10, %s8
  // Predicated region
  $region2: #{tpu_custom_call.1} parent=0 // pred_check
    _
  $region3: #{tpu_custom_call.1} parent=0 // pred_check_branch
    %13 = sbr.rel (0) target = $region5
  $region4: #{tpu_custom_call.1} parent=0 // pred_region
    _
  $region5: #{tpu_custom_call.1} parent=0 // pred_fallthru
    _
  // Predicated region
  $region6: #{tpu_custom_call.1} parent=0 // pred_check
    _
  $region7: #{tpu_custom_call.1} parent=0 // pred_check_branch
    %15 = sbr.rel (0) target = $region9
  $region8: #{tpu_custom_call.1} parent=0 // pred_region
    _
  $region9: #{tpu_custom_call.1} parent=0 // pred_fallthru
    _
  // Predicated region
  $region10: #{tpu_custom_call.1} parent=0 // pred_check
    _
  $region11: #{tpu_custom_call.1} parent=0 // pred_check_branch
    %17 = sbr.rel (0) target = $region13
  $region12: #{tpu_custom_call.1} parent=0 // pred_region
    _
  $region13: #{tpu_custom_call.1} parent=0 // pred_fallthru
    _
  // Predicated region
  $region14: #{tpu_custom_call.1} parent=0 // pred_check
    _
  $region15: #{tpu_custom_call.1} parent=0 // pred_check_branch
    %19 = sbr.rel (0) target = $region17
  $region16: #{tpu_custom_call.1} parent=0 // pred_region
    _
  $region17: #{tpu_custom_call.1} parent=0 // pred_fallthru
    _
  // Predicated region
  $region18: #{tpu_custom_call.1} parent=0 // pred_check
    _
  $region19: #{tpu_custom_call.1} parent=0 // pred_check_branch
    %21 = sbr.rel (0) target = $region21
  $region20: #{tpu_custom_call.1} parent=0 // pred_region
    _
  $region21: #{tpu_custom_call.1} parent=0 // pred_fallthru
    _
  // Predicated region
  $region22: #{tpu_custom_call.1} parent=0 // pred_check
    _
  $region23: #{tpu_custom_call.1} parent=0 // pred_check_branch
    %23 = sbr.rel (0) target = $region25
  $region24: #{tpu_custom_call.1} parent=0 // pred_region
    _
  $region25: #{tpu_custom_call.1} parent=0 // pred_fallthru
    _
  // Predicated region
  $region26: #{tpu_custom_call.1} parent=0 // pred_check
    _
  $region27: #{tpu_custom_call.1} parent=0 // pred_check_branch
    %25 = sbr.rel (0) target = $region29
  $region28: #{tpu_custom_call.1} parent=0 // pred_region
    _
  $region29: #{tpu_custom_call.1} parent=0 // pred_fallthru
    _
  %v26 = vld [vmem:[%s1] sm:$0xff]
  %v27 = vld [vmem:[%s1 + $0x8] sm:$0xff]
  %v28 = vld [vmem:[%s1 + $0x10] sm:$0xff]
  %v29 = vld [vmem:[%s1 + $0x18] sm:$0xff]
  %v30 = vld [vmem:[%s0] sm:$0xff]
  %v31 = vld [vmem:[%s2] sm:$0xff]
  %v32 = vld [vmem:[%s2 + $0x8] sm:$0xff]
  %v33 = vld [vmem:[%s2 + $0x10] sm:$0xff]
  %v34 = vld [vmem:[%s2 + $0x18] sm:$0xff]
  %36 = vset.pattern.permute.xlu0 0
  %37 = vperm.xlu0 %36, %v31
  %v38 = vpop.permute.xlu0 %37
  %41 = vset.pattern.permute.xlu0 0
  %42 = vperm.xlu0 %41, %v32
  %v43 = vpop.permute.xlu0 %42
  %46 = vset.pattern.permute.xlu0 0
  %47 = vperm.xlu0 %46, %v33
  %v48 = vpop.permute.xlu0 %47
  %51 = vset.pattern.permute.xlu0 0
  %52 = vperm.xlu0 %51, %v34
  %v53 = vpop.permute.xlu0 %52
  %vm55 = vcmask 64512
  %v57 = vsel %vm55, %v26, 0
  %v60 = vsel %vm55, %v27, 0
  %v63 = vsel %vm55, %v28, 0
  %v66 = vsel %vm55, %v29, 0
  %v69 = vsel %vm55, %v30, 0
  %71 = vmatprep.subr.mxu0 0.0
  %72 = vmatpush1.xpose.msra.mxu0 %v69
  %73 = vmatprep.subr.mxu0 0.0
  %74 = vmatpush1.xpose.msra.mxu0 0.0
  %75 = vmatprep.subr.mxu0 0.0
  %76 = vmatpush1.xpose.msra.mxu0 0.0
  %77 = vmatprep.subr.mxu0 0.0
  %78 = vmatpush1.xpose.msra.mxu0 0.0
  %79 = vmatprep.subr.mxu0 0.0
  %80 = vmatpush1.xpose.msra.mxu0 0.0
  %81 = vmatprep.subr.mxu0 0.0
  %82 = vmatpush1.xpose.msra.mxu0 0.0
  %83 = vmatprep.subr.mxu0 0.0
  %84 = vmatpush1.xpose.msra.mxu0 0.0
  %85 = vmatprep.subr.mxu0 0.0
  %86 = vmatpush1.xpose.msra.mxu0 0.0
  %87 = vmatprep.subr.mxu0 0.0
  %88 = vmatpush1.xpose.msra.mxu0 0.0
  %89 = vmatprep.subr.mxu0 0.0
  %90 = vmatpush1.xpose.msra.mxu0 0.0
  %91 = vmatprep.subr.mxu0 0.0
  %92 = vmatpush1.xpose.msra.mxu0 0.0
  %93 = vmatprep.subr.mxu0 0.0
  %94 = vmatpush1.xpose.msra.mxu0 0.0
  %95 = vmatprep.subr.mxu0 0.0
  %96 = vmatpush1.xpose.msra.mxu0 0.0
  %97 = vmatprep.subr.mxu0 0.0
  %98 = vmatpush1.xpose.msra.mxu0 0.0
  %99 = vmatprep.subr.mxu0 0.0
  %100 = vmatpush1.xpose.msra.mxu0 0.0
  %101 = vmatprep.subr.mxu0 0.0
  %102 = vmatpush1.xpose.msra.mxu0 0.0
  %103 = vmatprep.subr.mxu0 0.0
  %104 = vmatpush1.xpose.msra.mxu0 0.0
  %105 = vmatprep.subr.mxu0 0.0
  %106 = vmatpush1.xpose.msra.mxu0 0.0
  %107 = vmatprep.subr.mxu0 0.0
  %108 = vmatpush1.xpose.msra.mxu0 0.0
  %109 = vmatprep.subr.mxu0 0.0
  %110 = vmatpush1.xpose.msra.mxu0 0.0
  %111 = vmatprep.subr.mxu0 0.0
  %112 = vmatpush1.xpose.msra.mxu0 0.0
  %113 = vmatprep.subr.mxu0 0.0
  %114 = vmatpush1.xpose.msra.mxu0 0.0
  %115 = vmatprep.subr.mxu0 0.0
  %116 = vmatpush1.xpose.msra.mxu0 0.0
  %117 = vmatprep.subr.mxu0 0.0
  %118 = vmatpush1.xpose.msra.mxu0 0.0
  %119 = vmatprep.subr.mxu0 0.0
  %120 = vmatpush1.xpose.msra.mxu0 0.0
  %121 = vmatprep.subr.mxu0 0.0
  %122 = vmatpush1.xpose.msra.mxu0 0.0
  %123 = vmatprep.subr.mxu0 0.0
  %124 = vmatpush1.xpose.msra.mxu0 0.0
  %125 = vmatprep.subr.mxu0 0.0
  %126 = vmatpush1.xpose.msra.mxu0 0.0
  %127 = vmatprep.subr.mxu0 0.0
  %128 = vmatpush1.xpose.msra.mxu0 0.0
  %129 = vmatprep.subr.mxu0 0.0
  %130 = vmatpush1.xpose.msra.mxu0 0.0
  %131 = vmatprep.subr.mxu0 0.0
  %132 = vmatpush1.xpose.msra.mxu0 0.0
  %133 = vmatprep.subr.mxu0 0.0
  %134 = vmatpush1.xpose.msra.mxu0 0.0
  %135 = vmatprep.mubr.f32.mxu0 0.0
  %136 = vmatmul.mubr.f32.gmra.mrb[0].mxu0 %v57
  %v137 = vpop.f32.mrb[0].mxu0
  %v138 = vadd.f32 %v38, %v137
  %v139 = vpop.f32.mrb[0].mxu0
  %140 = vmatprep.mubr.f32.mxu0 0.0
  %141 = vmatmul.mubr.f32.gmra.mrb[0].mxu0 %v60
  %v142 = vpop.f32.mrb[0].mxu0
  %v143 = vadd.f32 %v43, %v142
  %v144 = vpop.f32.mrb[0].mxu0
  %145 = vmatprep.mubr.f32.mxu0 0.0
  %146 = vmatmul.mubr.f32.gmra.mrb[0].mxu0 %v63
  %v147 = vpop.f32.mrb[0].mxu0
  %v148 = vadd.f32 %v48, %v147
  %v149 = vpop.f32.mrb[0].mxu0
  %150 = vmatprep.mubr.f32.mxu0 0.0
  %151 = vmatmul.mubr.f32.gmra.mrb[0].mxu0 %v66
  %v152 = vpop.f32.mrb[0].mxu0
  %v153 = vadd.f32 %v53, %v152
  %v154 = vpop.f32.mrb[0].mxu0
  %155 = vdwg.mxu0
  %v156 = vtanh.pop %v138
  %v157 = vtanh.pop %v143
  %v158 = vtanh.pop %v148
  %v159 = vtanh.pop %v153
  %v160 = vld [vmem:[%s3] sm:$0xff]
  %v161 = vld [vmem:[%s3 + $0x8] sm:$0xff]
  %v162 = vld [vmem:[%s3 + $0x10] sm:$0xff]
  %v163 = vld [vmem:[%s3 + $0x18] sm:$0xff]
  %v164 = vld [vmem:[%s4] sm:$0xff]
  %v165 = vld [vmem:[%s4 + $0x8] sm:$0xff]
  %v166 = vld [vmem:[%s4 + $0x10] sm:$0xff]
  %v167 = vld [vmem:[%s4 + $0x18] sm:$0xff]
  %169 = vset.pattern.permute.xlu0 0
  %170 = vperm.xlu0 %169, %v164
  %v171 = vpop.permute.xlu0 %170
  %174 = vset.pattern.permute.xlu0 0
  %175 = vperm.xlu0 %174, %v165
  %v176 = vpop.permute.xlu0 %175
  %179 = vset.pattern.permute.xlu0 0
  %180 = vperm.xlu0 %179, %v166
  %v181 = vpop.permute.xlu0 %180
  %184 = vset.pattern.permute.xlu0 0
  %185 = vperm.xlu0 %184, %v167
  %v186 = vpop.permute.xlu0 %185
  %vm188 = vcmask 261120
  %v190 = vsel %vm188, %v160, 0
  %v193 = vsel %vm188, %v161, 0
  %v196 = vsel %vm188, %v162, 0
  %v199 = vsel %vm188, %v163, 0
  %201 = vmatprep.subr.mxu0 0.0
  %202 = vmatpush1.msra.mxu0 %v156
  %203 = vmatprep.subr.mxu0 0.0
  %204 = vmatpush1.msra.mxu0 %v157
  %205 = vmatprep.subr.mxu0 0.0
  %206 = vmatpush1.msra.mxu0 %v158
  %207 = vmatprep.subr.mxu0 0.0
  %208 = vmatpush1.msra.mxu0 %v159
  %209 = vmatprep.subr.mxu0 0.0
  %210 = vmatpush1.msra.mxu0 0.0
  %211 = vmatprep.subr.mxu0 0.0
  %212 = vmatpush1.msra.mxu0 0.0
  %213 = vmatprep.subr.mxu0 0.0
  %214 = vmatpush1.msra.mxu0 0.0
  %215 = vmatprep.subr.mxu0 0.0
  %216 = vmatpush1.msra.mxu0 0.0
  %217 = vmatprep.subr.mxu0 0.0
  %218 = vmatpush1.msra.mxu0 0.0
  %219 = vmatprep.subr.mxu0 0.0
  %220 = vmatpush1.msra.mxu0 0.0
  %221 = vmatprep.subr.mxu0 0.0
  %222 = vmatpush1.msra.mxu0 0.0
  %223 = vmatprep.subr.mxu0 0.0
  %224 = vmatpush1.msra.mxu0 0.0
  %225 = vmatprep.subr.mxu0 0.0
  %226 = vmatpush1.msra.mxu0 0.0
  %227 = vmatprep.subr.mxu0 0.0
  %228 = vmatpush1.msra.mxu0 0.0
  %229 = vmatprep.subr.mxu0 0.0
  %230 = vmatpush1.msra.mxu0 0.0
  %231 = vmatprep.subr.mxu0 0.0
  %232 = vmatpush1.msra.mxu0 0.0
  %233 = vmatprep.subr.mxu0 0.0
  %234 = vmatpush1.msra.mxu0 0.0
  %235 = vmatprep.subr.mxu0 0.0
  %236 = vmatpush1.msra.mxu0 0.0
  %237 = vmatprep.subr.mxu0 0.0
  %238 = vmatpush1.msra.mxu0 0.0
  %239 = vmatprep.subr.mxu0 0.0
  %240 = vmatpush1.msra.mxu0 0.0
  %241 = vmatprep.subr.mxu0 0.0
  %242 = vmatpush1.msra.mxu0 0.0
  %243 = vmatprep.subr.mxu0 0.0
  %244 = vmatpush1.msra.mxu0 0.0
  %245 = vmatprep.subr.mxu0 0.0
  %246 = vmatpush1.msra.mxu0 0.0
  %247 = vmatprep.subr.mxu0 0.0
  %248 = vmatpush1.msra.mxu0 0.0
  %249 = vmatprep.subr.mxu0 0.0
  %250 = vmatpush1.msra.mxu0 0.0
  %251 = vmatprep.subr.mxu0 0.0
  %252 = vmatpush1.msra.mxu0 0.0
  %253 = vmatprep.subr.mxu0 0.0
  %254 = vmatpush1.msra.mxu0 0.0
  %255 = vmatprep.subr.mxu0 0.0
  %256 = vmatpush1.msra.mxu0 0.0
  %257 = vmatprep.subr.mxu0 0.0
  %258 = vmatpush1.msra.mxu0 0.0
  %259 = vmatprep.subr.mxu0 0.0
  %260 = vmatpush1.msra.mxu0 0.0
  %261 = vmatprep.subr.mxu0 0.0
  %262 = vmatpush1.msra.mxu0 0.0
  %263 = vmatprep.subr.mxu0 0.0
  %264 = vmatpush1.msra.mxu0 0.0
  %265 = vmatprep.mubr.f32.mxu0 0.0
  %266 = vmatmul.mubr.f32.gmra.mrb[0].mxu0 %v190
  %v267 = vpop.f32.mrb[0].mxu0
  %v268 = vadd.f32 %v171, %v267
  %v269 = vpop.f32.mrb[0].mxu0
  %270 = vmatprep.mubr.f32.mxu0 0.0
  %271 = vmatmul.mubr.f32.gmra.mrb[0].mxu0 %v193
  %v272 = vpop.f32.mrb[0].mxu0
  %v273 = vadd.f32 %v176, %v272
  %v274 = vpop.f32.mrb[0].mxu0
  %275 = vmatprep.mubr.f32.mxu0 0.0
  %276 = vmatmul.mubr.f32.gmra.mrb[0].mxu0 %v196
  %v277 = vpop.f32.mrb[0].mxu0
  %v278 = vadd.f32 %v181, %v277
  %v279 = vpop.f32.mrb[0].mxu0
  %280 = vmatprep.mubr.f32.mxu0 0.0
  %281 = vmatmul.mubr.f32.gmra.mrb[0].mxu0 %v199
  %v282 = vpop.f32.mrb[0].mxu0
  %v283 = vadd.f32 %v186, %v282
  %v284 = vpop.f32.mrb[0].mxu0
  %285 = vdwg.mxu0
  %v286 = vtanh.pop %v268
  %v287 = vtanh.pop %v273
  %v288 = vtanh.pop %v278
  %v289 = vtanh.pop %v283
  %290 = vxpose.xlu0.b32.start [1/16] %v286, 128
  %291 = vxpose.xlu0.b32.cont [2/16] %v287, 128
  %292 = vxpose.xlu0.b32.cont [3/16] %v288, 128
  %293 = vxpose.xlu0.b32.cont [4/16] %v289, 128
  %294 = vxpose.xlu0.b32.cont [5/16] 0.0, 128
  %295 = vxpose.xlu0.b32.cont [6/16] 0.0, 128
  %296 = vxpose.xlu0.b32.cont [7/16] 0.0, 128
  %297 = vxpose.xlu0.b32.cont [8/16] 0.0, 128
  %298 = vxpose.xlu0.b32.cont [9/16] 0.0, 128
  %299 = vxpose.xlu0.b32.cont [10/16] 0.0, 128
  %300 = vxpose.xlu0.b32.cont [11/16] 0.0, 128
  %301 = vxpose.xlu0.b32.cont [12/16] 0.0, 128
  %302 = vxpose.xlu0.b32.cont [13/16] 0.0, 128
  %303 = vxpose.xlu0.b32.cont [14/16] 0.0, 128
  %304 = vxpose.xlu0.b32.cont [15/16] 0.0, 128
  %305 = vxpose.xlu0.b32.end [16/16] 0.0, 128
  %v306 = vpop.trf.xlu0
  %v307 = vpop.trf.xlu0
  %v308 = vpop.trf.xlu0
  %v309 = vpop.trf.xlu0
  %v310 = vpop.trf.xlu0
  %v311 = vpop.trf.xlu0
  %v312 = vpop.trf.xlu0
  %v313 = vpop.trf.xlu0
  %v314 = vpop.trf.xlu0
  %v315 = vpop.trf.xlu0
  %v316 = vpop.trf.xlu0
  %v317 = vpop.trf.xlu0
  %v318 = vpop.trf.xlu0
  %v319 = vpop.trf.xlu0
  %v320 = vpop.trf.xlu0
  %v321 = vpop.trf.xlu0
  %v322 = vld [vmem:[%s5] sm:$0xf]
  %v323 = vld [vmem:[%s6] sm:$0x1]
  %v325 = vlaneseq
  %v326 = vshrl.u32 %v325, 7
  %v327 = vsub.s32 0, %v326
  %v328 = vrot.slane %v323, %v327
  %v331 = vsel %vm188, %v306, 0
  %v334 = vsel %vm188, %v322, 0
  %336 = vmatprep.subr.mxu0 0.0
  %337 = vmatpush1.xpose.msra.mxu0 %v334
  %338 = vmatprep.subr.mxu0 0.0
  %339 = vmatpush1.xpose.msra.mxu0 0.0
  %340 = vmatprep.subr.mxu0 0.0
  %341 = vmatpush1.xpose.msra.mxu0 0.0
  %342 = vmatprep.subr.mxu0 0.0
  %343 = vmatpush1.xpose.msra.mxu0 0.0
  %344 = vmatprep.subr.mxu0 0.0
  %345 = vmatpush1.xpose.msra.mxu0 0.0
  %346 = vmatprep.subr.mxu0 0.0
  %347 = vmatpush1.xpose.msra.mxu0 0.0
  %348 = vmatprep.subr.mxu0 0.0
  %349 = vmatpush1.xpose.msra.mxu0 0.0
  %350 = vmatprep.subr.mxu0 0.0
  %351 = vmatpush1.xpose.msra.mxu0 0.0
  %352 = vmatprep.subr.mxu0 0.0
  %353 = vmatpush1.xpose.msra.mxu0 0.0
  %354 = vmatprep.subr.mxu0 0.0
  %355 = vmatpush1.xpose.msra.mxu0 0.0
  %356 = vmatprep.subr.mxu0 0.0
  %357 = vmatpush1.xpose.msra.mxu0 0.0
  %358 = vmatprep.subr.mxu0 0.0
  %359 = vmatpush1.xpose.msra.mxu0 0.0
  %360 = vmatprep.subr.mxu0 0.0
  %361 = vmatpush1.xpose.msra.mxu0 0.0
  %362 = vmatprep.subr.mxu0 0.0
  %363 = vmatpush1.xpose.msra.mxu0 0.0
  %364 = vmatprep.subr.mxu0 0.0
  %365 = vmatpush1.xpose.msra.mxu0 0.0
  %366 = vmatprep.subr.mxu0 0.0
  %367 = vmatpush1.xpose.msra.mxu0 0.0
  %368 = vmatprep.subr.mxu0 0.0
  %369 = vmatpush1.xpose.msra.mxu0 0.0
  %370 = vmatprep.subr.mxu0 0.0
  %371 = vmatpush1.xpose.msra.mxu0 0.0
  %372 = vmatprep.subr.mxu0 0.0
  %373 = vmatpush1.xpose.msra.mxu0 0.0
  %374 = vmatprep.subr.mxu0 0.0
  %375 = vmatpush1.xpose.msra.mxu0 0.0
  %376 = vmatprep.subr.mxu0 0.0
  %377 = vmatpush1.xpose.msra.mxu0 0.0
  %378 = vmatprep.subr.mxu0 0.0
  %379 = vmatpush1.xpose.msra.mxu0 0.0
  %380 = vmatprep.subr.mxu0 0.0
  %381 = vmatpush1.xpose.msra.mxu0 0.0
  %382 = vmatprep.subr.mxu0 0.0
  %383 = vmatpush1.xpose.msra.mxu0 0.0
  %384 = vmatprep.subr.mxu0 0.0
  %385 = vmatpush1.xpose.msra.mxu0 0.0
  %386 = vmatprep.subr.mxu0 0.0
  %387 = vmatpush1.xpose.msra.mxu0 0.0
  %388 = vmatprep.subr.mxu0 0.0
  %389 = vmatpush1.xpose.msra.mxu0 0.0
  %390 = vmatprep.subr.mxu0 0.0
  %391 = vmatpush1.xpose.msra.mxu0 0.0
  %392 = vmatprep.subr.mxu0 0.0
  %393 = vmatpush1.xpose.msra.mxu0 0.0
  %394 = vmatprep.subr.mxu0 0.0
  %395 = vmatpush1.xpose.msra.mxu0 0.0
  %396 = vmatprep.subr.mxu0 0.0
  %397 = vmatpush1.xpose.msra.mxu0 0.0
  %398 = vmatprep.subr.mxu0 0.0
  %399 = vmatpush1.xpose.msra.mxu0 0.0
  %400 = vmatprep.mubr.f32.mxu0 0.0
  %401 = vmatmul.mubr.f32.gmra.mrb[0].mxu0 %v331
  %v402 = vpop.f32.mrb[0].mxu0
  %v403 = vadd.f32 %v328, %v402
  %v404 = vpop.f32.mrb[0].mxu0
  %405 = vdwg.mxu0
  %v406 = vsub.f32 0.0, %v403
  %v407 = vmul.f32 %v406, 1.442695
  %v408 = vpow.pop %v407
  %v409 = vadd.f32 %v408, 1.0
  %v410 = vrcp.pop %v409
  %v411 = vmul.f32 2.0, %v410
  %vm412 = vcmask 31744
  %413 = vst.msk [vmem:[%s7] sm:$0xff] %vm412, %v411
  // Predicated region
  $region30: #{tpu_custom_call.1} parent=0 // pred_check
    _
  $region31: #{tpu_custom_call.1} parent=0 // pred_check_branch
    %415 = sbr.rel (0) target = $region33
  $region32: #{tpu_custom_call.1} parent=0 // pred_region
    _
  $region33: #{tpu_custom_call.1} parent=0 // pred_fallthru
    _
  // Predicated region
  $region34: #{tpu_custom_call.1} parent=0 // pred_check
    _
  $region35: #{tpu_custom_call.1} parent=0 // pred_check_branch
    %417 = sbr.rel (0) target = $region37
  $region36: #{tpu_custom_call.1} parent=0 // pred_region
    _
  $region37: #{tpu_custom_call.1} parent=0 // pred_fallthru
    _

</llo_original>
